<compile_context>
chip_gen: v6e
topology: v6e:2x2x1
jax: 0.10.0
libtpu: 0.0.40
codegen_flags: <defaults>
</compile_context>

<pallas_src>
import jax
import jax.numpy as jnp
from jax.experimental import pallas as pl
from jax.experimental.pallas import tpu as pltpu


def _round_up(x, m):
    return (x + m - 1) // m * m


# ----------------------------- Pallas kernels --------------------------------
def _gcn_layer1_kernel(a_ref, xw_ref, b1_ref, w2_ref, o_ref, acc_ref):
    """o = ( relu( A_i8 @ xw_scaled + b1 ) ) @ w2_scaled    for one row tile.

    grid = (row tiles, K tiles); K (columns of A) is the innermost reduction
    axis.  acc_ref is an f32 (tm, h_pad) accumulator kept in VMEM scratch.
    """
    k = pl.program_id(1)

    @pl.when(k == 0)
    def _():
        acc_ref[...] = jnp.zeros_like(acc_ref)

    # int8 -> f32 -> bf16 upcast on the VPU (huge slack), bf16 MXU matmul,
    # f32 accumulate.  int8 values are exactly representable in bf16.
    a_bf16 = a_ref[...].astype(jnp.float32).astype(jnp.bfloat16)
    acc_ref[...] += jnp.dot(a_bf16, xw_ref[...],
                            preferred_element_type=jnp.float32)

    @pl.when(k == pl.num_programs(1) - 1)
    def _():
        h = jnp.maximum(acc_ref[...] + b1_ref[...], 0.0)
        o_ref[...] = jnp.dot(h.astype(jnp.bfloat16), w2_ref[...],
                             preferred_element_type=jnp.float32
                             ).astype(o_ref.dtype)


def _gcn_layer2_kernel(a_ref, h2_ref, b2_ref, o_ref, acc_ref):
    """o = A_i8 @ h2_scaled + b2    for one row tile (same K-tiled structure)."""
    k = pl.program_id(1)

    @pl.when(k == 0)
    def _():
        acc_ref[...] = jnp.zeros_like(acc_ref)

    a_bf16 = a_ref[...].astype(jnp.float32).astype(jnp.bfloat16)
    acc_ref[...] += jnp.dot(a_bf16, h2_ref[...],
                            preferred_element_type=jnp.float32)

    @pl.when(k == pl.num_programs(1) - 1)
    def _():
        o_ref[...] = (acc_ref[...] + b2_ref[...]).astype(o_ref.dtype)


# ------------------------------ wrapper ---------------------------------------
def fused_gcn_forward(a_hat, x, w1, b1, w2, b2, *, row_tile=128, col_tile=512):
    """y = A_hat @ relu(A_hat @ (x @ W1) + b1) @ W2 + b2 via two pallas_calls."""
    n, f_in = x.shape
    hidden = w1.shape[1]
    f_out = w2.shape[1]

    h_pad = _round_up(hidden, 128)
    o_pad = _round_up(f_out, 128)
    n_pad = _round_up(n, 128)          # pad to lane width only, not tile multiple

    tm = min(row_tile, n_pad)          # 128 always divides n_pad
    tk = col_tile
    while tk > 128 and n_pad % tk != 0:
        tk //= 2
    tk = min(max(tk, 128), n_pad)
    n_tiles = n_pad // tm
    k_tiles = n_pad // tk

    # ---- quantize A_hat to int8 with one global scale (entries in [0, 1]) ----
    a32 = a_hat.astype(jnp.float32)
    max_abs = jnp.max(jnp.abs(a32))
    scale = jnp.maximum(max_abs, 1e-12) / 127.0
    a_q = jnp.clip(jnp.round(a32 / scale), -127.0, 127.0).astype(jnp.int8)
    a_i8 = jnp.zeros((n_pad, n_pad), jnp.int8).at[:n, :n].set(a_q)

    # ---- hoist X @ W1 out of the kernel; fold the quantization scale in  ----
    xw = x.astype(jnp.float32) @ w1.astype(jnp.float32)            # (n, hidden)
    xw1s = jnp.zeros((n_pad, h_pad), jnp.bfloat16).at[:n, :hidden].set(
        (scale * xw).astype(jnp.bfloat16))
    b1_p = jnp.zeros((1, h_pad), jnp.float32).at[:, :hidden].set(
        jnp.asarray(b1, jnp.float32).reshape(1, hidden))
    # scale folded into W2 so the layer-1 output already carries it for layer 2
    w2s_p = jnp.zeros((h_pad, o_pad), jnp.bfloat16).at[:hidden, :f_out].set(
        (scale * w2.astype(jnp.float32)).astype(jnp.bfloat16))
    b2_p = jnp.zeros((1, o_pad), jnp.float32).at[:, :f_out].set(
        jnp.asarray(b2, jnp.float32).reshape(1, f_out))

    compiler_params = pltpu.CompilerParams(
        dimension_semantics=("parallel", "arbitrary"),
        vmem_limit_bytes=32 * 1024 * 1024)

    # ---------------------------- layer 1 kernel -----------------------------
    flops1 = 2 * n_pad * n_pad * h_pad + 2 * n_pad * h_pad * o_pad
    bytes1 = (n_pad * n_pad                      # A int8, streamed once
              + n_tiles * n_pad * h_pad * 2      # xw K-slices, re-streamed per row tile
              + h_pad * o_pad * 2 + 4 * (h_pad + o_pad)
              + n_pad * o_pad * 2)               # bf16 output
    h2 = pl.pallas_call(
        _gcn_layer1_kernel,
        out_shape=jax.ShapeDtypeStruct((n_pad, o_pad), jnp.bfloat16),
        grid_spec=pltpu.PrefetchScalarGridSpec(
            num_scalar_prefetch=0,
            grid=(n_tiles, k_tiles),
            in_specs=[
                pl.BlockSpec((tm, tk), lambda i, k: (i, k)),        # A_i8 tile
                pl.BlockSpec((tk, h_pad), lambda i, k: (k, 0)),     # scale*(X@W1)
                pl.BlockSpec((1, h_pad), lambda i, k: (0, 0)),      # b1
                pl.BlockSpec((h_pad, o_pad), lambda i, k: (0, 0)),  # scale*W2
            ],
            out_specs=pl.BlockSpec((tm, o_pad), lambda i, k: (i, 0)),
            scratch_shapes=[pltpu.VMEM((tm, h_pad), jnp.float32)],
        ),
        compiler_params=compiler_params,
        cost_estimate=pl.CostEstimate(
            flops=flops1, transcendentals=0, bytes_accessed=bytes1),
    )(a_i8, xw1s, b1_p, w2s_p)

    # ---------------------------- layer 2 kernel -----------------------------
    flops2 = 2 * n_pad * n_pad * o_pad
    bytes2 = (n_pad * n_pad
              + n_tiles * n_pad * o_pad * 2
              + 4 * o_pad
              + n_pad * o_pad * 2)
    y = pl.pallas_call(
        _gcn_layer2_kernel,
        out_shape=jax.ShapeDtypeStruct((n_pad, o_pad), jnp.bfloat16),
        grid_spec=pltpu.PrefetchScalarGridSpec(
            num_scalar_prefetch=0,
            grid=(n_tiles, k_tiles),
            in_specs=[
                pl.BlockSpec((tm, tk), lambda i, k: (i, k)),        # A_i8 tile
                pl.BlockSpec((tk, o_pad), lambda i, k: (k, 0)),     # scale*(h@W2)
                pl.BlockSpec((1, o_pad), lambda i, k: (0, 0)),      # b2
            ],
            out_specs=pl.BlockSpec((tm, o_pad), lambda i, k: (i, 0)),
            scratch_shapes=[pltpu.VMEM((tm, o_pad), jnp.float32)],
        ),
        compiler_params=compiler_params,
        cost_estimate=pl.CostEstimate(
            flops=flops2, transcendentals=0, bytes_accessed=bytes2),
    )(a_i8, h2, b2_p)

    return y[:n, :f_out].astype(jnp.float32)


# ------------------------------ JAX glue -------------------------------------
def build_normalized_adjacency(edge_index, num_nodes):
    """Dense A_hat = D^{-1/2} (A + I) D^{-1/2}, matching GCNConv defaults.

    Uses .add so duplicate edges accumulate into both A and the degrees,
    matching PyG's scatter-sum message passing for multigraphs.
    """
    src, dst = edge_index[0], edge_index[1]
    adj = jnp.zeros((num_nodes, num_nodes), jnp.float32)
    # message flows src -> dst: out[dst] += norm * x[src]  =>  A_hat[dst, src]
    adj = adj.at[dst, src].add(1.0)
    adj = adj + jnp.eye(num_nodes, dtype=jnp.float32)       # add self loops
    deg = jnp.sum(adj, axis=1)
    d_inv_sqrt = jnp.where(deg > 0, 1.0 / jnp.sqrt(deg), 0.0)
    return adj * d_inv_sqrt[:, None] * d_inv_sqrt[None, :]


def supervised_gcnn_forward(embedding_weight, edge_index, params):
    """Equivalent of SupervisedGCNN.forward(features, edge_index)."""
    n = embedding_weight.shape[0]
    a_hat = build_normalized_adjacency(edge_index, n)
    return fused_gcn_forward(a_hat, embedding_weight,
                             params["w1"], params["b1"],
                             params["w2"], params["b2"])


def reference_forward(embedding_weight, edge_index, params):
    """Pure-JAX f32 reference for numerical validation."""
    n = embedding_weight.shape[0]
    a_hat = build_normalized_adjacency(edge_index, n)
    h = jnp.maximum(a_hat @ (embedding_weight @ params["w1"]) + params["b1"], 0.0)
    return a_hat @ (h @ params["w2"]) + params["b2"]


def init_params(key, input_dim, hidden_dim, output_dim):
    k1, k2 = jax.random.split(key)
    # Glorot-style deterministic init (GCNConv default), zero bias.
    w1 = jax.random.normal(k1, (input_dim, hidden_dim), jnp.float32)
    w1 = w1 * jnp.sqrt(2.0 / (input_dim + hidden_dim))
    w2 = jax.random.normal(k2, (hidden_dim, output_dim), jnp.float32)
    w2 = w2 * jnp.sqrt(2.0 / (hidden_dim + output_dim))
    b1 = jnp.zeros((1, hidden_dim), jnp.float32)
    b2 = jnp.zeros((1, output_dim), jnp.float32)
    return {"w1": w1, "b1": b1, "w2": w2, "b2": b2}


# TODO(synk): SupervisedGCNN.loss (weighted CrossEntropyLoss) is a training
# objective, not part of forward(); left out of the kernel.

if __name__ == "__main__":
    key = jax.random.PRNGKey(0)
    k_emb, k_par = jax.random.split(key)

    num_nodes = 16
    input_dim = 8
    hidden_dim = 32
    num_classes = 4          # output_dim == num_classes

    # features = nn.Embedding(num_nodes, input_dim); x = features.weight
    embedding_weight = jax.random.normal(
        k_emb, (num_nodes, input_dim), jnp.float32)

    # deterministic ring graph (bidirectional edges), edge_index: [2, E]
    idx = jnp.arange(num_nodes)
    src = jnp.concatenate([idx, (idx + 1) % num_nodes])
    dst = jnp.concatenate([(idx + 1) % num_nodes, idx])
    edge_index = jnp.stack([src, dst], axis=0)

    params = init_params(k_par, input_dim, hidden_dim, num_classes)

    fwd = jax.jit(supervised_gcnn_forward)
    scores = fwd(embedding_weight, edge_index, params)
    jax.block_until_ready(scores)
    assert scores.shape == (num_nodes, num_classes)

    # Validate int8-A / bf16-operand / f32-accumulate kernels vs f32 reference.
    ref = reference_forward(embedding_weight, edge_index, params)
    max_err = float(jnp.max(jnp.abs(scores - ref)))
    assert jnp.allclose(scores, ref, atol=5e-2, rtol=5e-2), max_err

    print("KERNEL_OK")
</pallas_src>

<mosaic_0001>
module attributes {stable_mosaic.version = 11 : i64} {
  func.func private @main(%arg0: i32) attributes {dimension_semantics = [#tpu.dimension_semantics<core_parallel>], iteration_bounds = array<i64: 2>, tpu.core_type = #tpu.core_type<sc_scalar_subcore>, window_params = []} {
    return
  }
}

module attributes {stable_mosaic.version = 11 : i64} {
  func.func private @main(%arg0: i32) attributes {dimension_semantics = [#tpu.dimension_semantics<core_parallel>], iteration_bounds = array<i64: 2>, tpu.core_type = #tpu.core_type<sc_scalar_subcore>, window_params = []} {
    return
  }
}

module attributes {stable_mosaic.version = 11 : i64} {
  func.func @_gcn_layer1_kernel(%arg0: i32, %arg1: i32, %arg2: memref<128x128xi8, #tpu.memory_space<vmem>>, %arg3: memref<128x128xbf16, #tpu.memory_space<vmem>>, %arg4: memref<1x128xf32, #tpu.memory_space<vmem>>, %arg5: memref<128x128xbf16, #tpu.memory_space<vmem>>, %arg6: memref<128x128xbf16, #tpu.memory_space<vmem>>, %arg7: memref<128x128xf32, #tpu.memory_space<vmem>>) attributes {dimension_semantics = [#tpu.dimension_semantics<parallel>, #tpu.dimension_semantics<arbitrary>], iteration_bounds = array<i64: 1, 1>, scalar_prefetch = 0 : i64, scratch_operands = 1 : i64, tpu.core_type = #tpu.core_type<tc>, window_params = [{transform_indices = @transform_0, window_bounds = array<i64: 128, 128>}, {transform_indices = @transform_1, window_bounds = array<i64: 128, 128>}, {pipeline_mode = #tpu.pipeline_mode<synchronous>, transform_indices = @transform_2, window_bounds = array<i64: 1, 128>}, {pipeline_mode = #tpu.pipeline_mode<synchronous>, transform_indices = @transform_3, window_bounds = array<i64: 128, 128>}, {transform_indices = @transform_4, window_bounds = array<i64: 128, 128>}]} {
    %c0_i32 = arith.constant 0 : i32
    %0 = arith.cmpi eq, %arg1, %c0_i32 : i32
    %1 = arith.extui %0 : i1 to i32
    %c0_i32_0 = arith.constant 0 : i32
    %2 = arith.cmpi ne, %1, %c0_i32_0 : i32
    scf.if %2 {
      %cst_10 = arith.constant 0.000000e+00 : f32
      %14 = vector.broadcast %cst_10 : f32 to vector<128x128xf32>
      %c0_11 = arith.constant 0 : index
      %c0_12 = arith.constant 0 : index
      %15 = vector.load %arg7[%c0_11, %c0_12] : memref<128x128xf32, #tpu.memory_space<vmem>>, vector<128x128xf32>
      tpu.vector_store %arg7[%c0_11, %c0_12], %14 {strides = array<i32>} : memref<128x128xf32, #tpu.memory_space<vmem>>, vector<128x128xf32>,
    } else {
    }
    %c0 = arith.constant 0 : index
    %c0_1 = arith.constant 0 : index
    %3 = vector.load %arg2[%c0, %c0_1] : memref<128x128xi8, #tpu.memory_space<vmem>>, vector<128x128xi8>
    %4 = arith.sitofp %3 : vector<128x128xi8> to vector<128x128xf32>
    %5 = arith.truncf %4 : vector<128x128xf32> to vector<128x128xbf16>
    %c0_2 = arith.constant 0 : index
    %c0_3 = arith.constant 0 : index
    %6 = vector.load %arg7[%c0_2, %c0_3] : memref<128x128xf32, #tpu.memory_space<vmem>>, vector<128x128xf32>
    %c0_4 = arith.constant 0 : index
    %c0_5 = arith.constant 0 : index
    %7 = vector.load %arg3[%c0_4, %c0_5] : memref<128x128xbf16, #tpu.memory_space<vmem>>, vector<128x128xbf16>
    %cst = arith.constant dense<0.000000e+00> : vector<128x128xf32>
    %8 = tpu.matmul %5, %7, %cst {dimension_numbers = #tpu.dot_dimension_numbers<[1], [0], [0], [1], [0, 0, 1, 1], [], []>} : vector<128x128xbf16>, vector<128x128xbf16>, vector<128x128xf32> -> vector<128x128xf32>
    %9 = arith.addf %6, %8 : vector<128x128xf32>
    %c0_6 = arith.constant 0 : index
    %c0_7 = arith.constant 0 : index
    %10 = vector.load %arg7[%c0_6, %c0_7] : memref<128x128xf32, #tpu.memory_space<vmem>>, vector<128x128xf32>
    tpu.vector_store %arg7[%c0_6, %c0_7], %9 {strides = array<i32>} : memref<128x128xf32, #tpu.memory_space<vmem>>, vector<128x128xf32>,
    %c0_i32_8 = arith.constant 0 : i32
    %11 = arith.cmpi eq, %arg1, %c0_i32_8 : i32
    %12 = arith.extui %11 : i1 to i32
    %c0_i32_9 = arith.constant 0 : i32
    %13 = arith.cmpi ne, %12, %c0_i32_9 : i32
    scf.if %13 {
      %c0_10 = arith.constant 0 : index
      %c0_11 = arith.constant 0 : index
      %14 = vector.load %arg7[%c0_10, %c0_11] : memref<128x128xf32, #tpu.memory_space<vmem>>, vector<128x128xf32>
      %c0_12 = arith.constant 0 : index
      %c0_13 = arith.constant 0 : index
      %15 = vector.load %arg4[%c0_12, %c0_13] : memref<1x128xf32, #tpu.memory_space<vmem>>, vector<1x128xf32>
      %16 = vector.broadcast %15 : vector<1x128xf32> to vector<128x128xf32>
      %17 = arith.addf %14, %16 : vector<128x128xf32>
      %cst_14 = arith.constant 0.000000e+00 : f32
      %18 = vector.broadcast %cst_14 : f32 to vector<128x128xf32>
      %19 = arith.maximumf %17, %18 : vector<128x128xf32>
      %20 = arith.truncf %19 : vector<128x128xf32> to vector<128x128xbf16>
      %c0_15 = arith.constant 0 : index
      %c0_16 = arith.constant 0 : index
      %21 = vector.load %arg5[%c0_15, %c0_16] : memref<128x128xbf16, #tpu.memory_space<vmem>>, vector<128x128xbf16>
      %cst_17 = arith.constant dense<0.000000e+00> : vector<128x128xf32>
      %22 = tpu.matmul %20, %21, %cst_17 {dimension_numbers = #tpu.dot_dimension_numbers<[1], [0], [0], [1], [0, 0, 1, 1], [], []>} : vector<128x128xbf16>, vector<128x128xbf16>, vector<128x128xf32> -> vector<128x128xf32>
      %23 = arith.truncf %22 : vector<128x128xf32> to vector<128x128xbf16>
      %c0_18 = arith.constant 0 : index
      %c0_19 = arith.constant 0 : index
      %24 = vector.load %arg6[%c0_18, %c0_19] : memref<128x128xbf16, #tpu.memory_space<vmem>>, vector<128x128xbf16>
      tpu.vector_store %arg6[%c0_18, %c0_19], %23 {strides = array<i32>} : memref<128x128xbf16, #tpu.memory_space<vmem>>, vector<128x128xbf16>,
    } else {
    }
    return
  }
  func.func @transform_0(%arg0: i32, %arg1: i32) -> (i32, i32) {
    %c0_i32 = arith.constant 0 : i32
    return %arg0, %arg1 : i32, i32
  }
  func.func @transform_1(%arg0: i32, %arg1: i32) -> (i32, i32) {
    %c0_i32 = arith.constant 0 : i32
    %c0_i32_0 = arith.constant 0 : i32
    return %arg1, %c0_i32 : i32, i32
  }
  func.func @transform_2(%arg0: i32, %arg1: i32) -> (i32, i32) {
    %c0_i32 = arith.constant 0 : i32
    %c0_i32_0 = arith.constant 0 : i32
    %c0_i32_1 = arith.constant 0 : i32
    return %c0_i32, %c0_i32_0 : i32, i32
  }
  func.func @transform_3(%arg0: i32, %arg1: i32) -> (i32, i32) {
    %c0_i32 = arith.constant 0 : i32
    %c0_i32_0 = arith.constant 0 : i32
    %c0_i32_1 = arith.constant 0 : i32
    return %c0_i32, %c0_i32_0 : i32, i32
  }
  func.func @transform_4(%arg0: i32, %arg1: i32) -> (i32, i32) {
    %c0_i32 = arith.constant 0 : i32
    %c0_i32_0 = arith.constant 0 : i32
    return %arg0, %c0_i32 : i32, i32
  }
}

module attributes {stable_mosaic.version = 11 : i64} {
  func.func @_gcn_layer2_kernel(%arg0: i32, %arg1: i32, %arg2: memref<128x128xi8, #tpu.memory_space<vmem>>, %arg3: memref<128x128xbf16, #tpu.memory_space<vmem>>, %arg4: memref<1x128xf32, #tpu.memory_space<vmem>>, %arg5: memref<128x128xbf16, #tpu.memory_space<vmem>>, %arg6: memref<128x128xf32, #tpu.memory_space<vmem>>) attributes {dimension_semantics = [#tpu.dimension_semantics<parallel>, #tpu.dimension_semantics<arbitrary>], iteration_bounds = array<i64: 1, 1>, scalar_prefetch = 0 : i64, scratch_operands = 1 : i64, tpu.core_type = #tpu.core_type<tc>, window_params = [{transform_indices = @transform_0, window_bounds = array<i64: 128, 128>}, {transform_indices = @transform_1, window_bounds = array<i64: 128, 128>}, {pipeline_mode = #tpu.pipeline_mode<synchronous>, transform_indices = @transform_2, window_bounds = array<i64: 1, 128>}, {transform_indices = @transform_3, window_bounds = array<i64: 128, 128>}]} {
    %c0_i32 = arith.constant 0 : i32
    %0 = arith.cmpi eq, %arg1, %c0_i32 : i32
    %1 = arith.extui %0 : i1 to i32
    %c0_i32_0 = arith.constant 0 : i32
    %2 = arith.cmpi ne, %1, %c0_i32_0 : i32
    scf.if %2 {
      %cst_10 = arith.constant 0.000000e+00 : f32
      %14 = vector.broadcast %cst_10 : f32 to vector<128x128xf32>
      %c0_11 = arith.constant 0 : index
      %c0_12 = arith.constant 0 : index
      %15 = vector.load %arg6[%c0_11, %c0_12] : memref<128x128xf32, #tpu.memory_space<vmem>>, vector<128x128xf32>
      tpu.vector_store %arg6[%c0_11, %c0_12], %14 {strides = array<i32>} : memref<128x128xf32, #tpu.memory_space<vmem>>, vector<128x128xf32>,
    } else {
    }
    %c0 = arith.constant 0 : index
    %c0_1 = arith.constant 0 : index
    %3 = vector.load %arg2[%c0, %c0_1] : memref<128x128xi8, #tpu.memory_space<vmem>>, vector<128x128xi8>
    %4 = arith.sitofp %3 : vector<128x128xi8> to vector<128x128xf32>
    %5 = arith.truncf %4 : vector<128x128xf32> to vector<128x128xbf16>
    %c0_2 = arith.constant 0 : index
    %c0_3 = arith.constant 0 : index
    %6 = vector.load %arg6[%c0_2, %c0_3] : memref<128x128xf32, #tpu.memory_space<vmem>>, vector<128x128xf32>
    %c0_4 = arith.constant 0 : index
    %c0_5 = arith.constant 0 : index
    %7 = vector.load %arg3[%c0_4, %c0_5] : memref<128x128xbf16, #tpu.memory_space<vmem>>, vector<128x128xbf16>
    %cst = arith.constant dense<0.000000e+00> : vector<128x128xf32>
    %8 = tpu.matmul %5, %7, %cst {dimension_numbers = #tpu.dot_dimension_numbers<[1], [0], [0], [1], [0, 0, 1, 1], [], []>} : vector<128x128xbf16>, vector<128x128xbf16>, vector<128x128xf32> -> vector<128x128xf32>
    %9 = arith.addf %6, %8 : vector<128x128xf32>
    %c0_6 = arith.constant 0 : index
    %c0_7 = arith.constant 0 : index
    %10 = vector.load %arg6[%c0_6, %c0_7] : memref<128x128xf32, #tpu.memory_space<vmem>>, vector<128x128xf32>
    tpu.vector_store %arg6[%c0_6, %c0_7], %9 {strides = array<i32>} : memref<128x128xf32, #tpu.memory_space<vmem>>, vector<128x128xf32>,
    %c0_i32_8 = arith.constant 0 : i32
    %11 = arith.cmpi eq, %arg1, %c0_i32_8 : i32
    %12 = arith.extui %11 : i1 to i32
    %c0_i32_9 = arith.constant 0 : i32
    %13 = arith.cmpi ne, %12, %c0_i32_9 : i32
    scf.if %13 {
      %c0_10 = arith.constant 0 : index
      %c0_11 = arith.constant 0 : index
      %14 = vector.load %arg6[%c0_10, %c0_11] : memref<128x128xf32, #tpu.memory_space<vmem>>, vector<128x128xf32>
      %c0_12 = arith.constant 0 : index
      %c0_13 = arith.constant 0 : index
      %15 = vector.load %arg4[%c0_12, %c0_13] : memref<1x128xf32, #tpu.memory_space<vmem>>, vector<1x128xf32>
      %16 = vector.broadcast %15 : vector<1x128xf32> to vector<128x128xf32>
      %17 = arith.addf %14, %16 : vector<128x128xf32>
      %18 = arith.truncf %17 : vector<128x128xf32> to vector<128x128xbf16>
      %c0_14 = arith.constant 0 : index
      %c0_15 = arith.constant 0 : index
      %19 = vector.load %arg5[%c0_14, %c0_15] : memref<128x128xbf16, #tpu.memory_space<vmem>>, vector<128x128xbf16>
      tpu.vector_store %arg5[%c0_14, %c0_15], %18 {strides = array<i32>} : memref<128x128xbf16, #tpu.memory_space<vmem>>, vector<128x128xbf16>,
    } else {
    }
    return
  }
  func.func @transform_0(%arg0: i32, %arg1: i32) -> (i32, i32) {
    %c0_i32 = arith.constant 0 : i32
    return %arg0, %arg1 : i32, i32
  }
  func.func @transform_1(%arg0: i32, %arg1: i32) -> (i32, i32) {
    %c0_i32 = arith.constant 0 : i32
    %c0_i32_0 = arith.constant 0 : i32
    return %arg1, %c0_i32 : i32, i32
  }
  func.func @transform_2(%arg0: i32, %arg1: i32) -> (i32, i32) {
    %c0_i32 = arith.constant 0 : i32
    %c0_i32_0 = arith.constant 0 : i32
    %c0_i32_1 = arith.constant 0 : i32
    return %c0_i32, %c0_i32_0 : i32, i32
  }
  func.func @transform_3(%arg0: i32, %arg1: i32) -> (i32, i32) {
    %c0_i32 = arith.constant 0 : i32
    %c0_i32_0 = arith.constant 0 : i32
    return %arg0, %c0_i32 : i32, i32
  }
}

</mosaic_0001>

<llo_original>
// kernel: supervised_gcnn_forward.2
$region0: #{supervised_gcnn_forward.2}
  #allocation0 [shape = 'u32[]', space=smem, size = 0x4, offset = 0x4, fixed_abs, tag = 'smem constant byte address 0x4 - core index']
  #allocation1 [shape = 'u32[144,128]{1,0:T(1,128)}', space=vmem, size = 0x12000, scoped, tag = 'internal scratch']
  #allocation2 [shape = 'f32[128,128]{1,0:T(8,128)}', space=vmem, size = 0x10000, scoped, tag = 'scratch operand']
  %s0 = inlined_call_operand.vmem [shape: s8[128,128], index: 0, kind: input, shape index: {}]
  %s1 = inlined_call_operand.vmem [shape: bf16[128,128], index: 1, kind: input, shape index: {}]
  %s2 = inlined_call_operand.vmem [shape: f32[1,128], index: 2, kind: input, shape index: {}]
  %s3 = inlined_call_operand.vmem [shape: bf16[128,128], index: 3, kind: input, shape index: {}]
  %s4 = inlined_call_operand.vmem [shape: bf16[128,128], index: 4, kind: output, shape index: {}]
  %s5 = sld [smem:[#allocation0]]
  $region34: #{supervised_gcnn_forward.2} parent=0
    _
  %s7 = ssub.s32 1, %s5
  %s8 = scalar_select 0, %s7, %s5
  // Predicated region
  $region2: #{supervised_gcnn_forward.2} parent=0 // pred_check
    _
  $region3: #{supervised_gcnn_forward.2} parent=0 // pred_check_branch
    %10 = sbr.rel (0) target = $region5
  $region4: #{supervised_gcnn_forward.2} parent=0 // pred_region
    _
  $region5: #{supervised_gcnn_forward.2} parent=0 // pred_fallthru
    _
  // Predicated region
  $region6: #{supervised_gcnn_forward.2} parent=0 // pred_check
    _
  $region7: #{supervised_gcnn_forward.2} parent=0 // pred_check_branch
    %12 = sbr.rel (0) target = $region9
  $region8: #{supervised_gcnn_forward.2} parent=0 // pred_region
    _
  $region9: #{supervised_gcnn_forward.2} parent=0 // pred_fallthru
    _
  // Predicated region
  $region10: #{supervised_gcnn_forward.2} parent=0 // pred_check
    _
  $region11: #{supervised_gcnn_forward.2} parent=0 // pred_check_branch
    %14 = sbr.rel (0) target = $region13
  $region12: #{supervised_gcnn_forward.2} parent=0 // pred_region
    _
  $region13: #{supervised_gcnn_forward.2} parent=0 // pred_fallthru
    _
  // Predicated region
  $region14: #{supervised_gcnn_forward.2} parent=0 // pred_check
    _
  $region15: #{supervised_gcnn_forward.2} parent=0 // pred_check_branch
    %16 = sbr.rel (0) target = $region17
  $region16: #{supervised_gcnn_forward.2} parent=0 // pred_region
    _
  $region17: #{supervised_gcnn_forward.2} parent=0 // pred_fallthru
    _
  %p18 = scmp.eq.s32.totalorder 0, 0
  // Predicated region
  $region18: #{supervised_gcnn_forward.2} parent=0 // pred_check
    %p19 = pneg %p18
  $region19: #{supervised_gcnn_forward.2} parent=0 // pred_check_branch
    %21 = sbr.rel (%p19) target = $region21
  $region20: #{supervised_gcnn_forward.2} parent=0 // pred_region
    %22 = vst [vmem:[#allocation2] sm:$0xff] 0.0
    %23 = vst [vmem:[#allocation2 + $0x8] sm:$0xff] 0.0
    %24 = vst [vmem:[#allocation2 + $0x10] sm:$0xff] 0.0
    %25 = vst [vmem:[#allocation2 + $0x18] sm:$0xff] 0.0
    %26 = vst [vmem:[#allocation2 + $0x20] sm:$0xff] 0.0
    %27 = vst [vmem:[#allocation2 + $0x28] sm:$0xff] 0.0
    %28 = vst [vmem:[#allocation2 + $0x30] sm:$0xff] 0.0
    %29 = vst [vmem:[#allocation2 + $0x38] sm:$0xff] 0.0
    %30 = vst [vmem:[#allocation2 + $0x40] sm:$0xff] 0.0
    %31 = vst [vmem:[#allocation2 + $0x48] sm:$0xff] 0.0
    %32 = vst [vmem:[#allocation2 + $0x50] sm:$0xff] 0.0
    %33 = vst [vmem:[#allocation2 + $0x58] sm:$0xff] 0.0
    %34 = vst [vmem:[#allocation2 + $0x60] sm:$0xff] 0.0
    %35 = vst [vmem:[#allocation2 + $0x68] sm:$0xff] 0.0
    %36 = vst [vmem:[#allocation2 + $0x70] sm:$0xff] 0.0
    %37 = vst [vmem:[#allocation2 + $0x78] sm:$0xff] 0.0
  $region21: #{supervised_gcnn_forward.2} parent=0 // pred_fallthru
    _
  %v38 = vld [vmem:[%s0] sm:$0xff]
  %v39 = vld [vmem:[%s0 + $0x8] sm:$0xff]
  %v40 = vld [vmem:[%s0 + $0x10] sm:$0xff]
  %v41 = vld [vmem:[%s0 + $0x18] sm:$0xff]
  %v42 = vunpack.c.l.s8.bf16 %v38
  %v43 = vunpack.c.h.s8.bf16 %v38
  %v44 = vunpack.c.l.s8.bf16 %v39
  %v45 = vunpack.c.h.s8.bf16 %v39
  %v46 = vunpack.c.l.s8.bf16 %v40
  %v47 = vunpack.c.h.s8.bf16 %v40
  %v48 = vunpack.c.l.s8.bf16 %v41
  %v49 = vunpack.c.h.s8.bf16 %v41
  %v50 = vld [vmem:[#allocation2] sm:$0xff]
  %v51 = vld [vmem:[#allocation2 + $0x8] sm:$0xff]
  %v52 = vld [vmem:[#allocation2 + $0x10] sm:$0xff]
  %v53 = vld [vmem:[#allocation2 + $0x18] sm:$0xff]
  %v54 = vld [vmem:[#allocation2 + $0x20] sm:$0xff]
  %v55 = vld [vmem:[#allocation2 + $0x28] sm:$0xff]
  %v56 = vld [vmem:[#allocation2 + $0x30] sm:$0xff]
  %v57 = vld [vmem:[#allocation2 + $0x38] sm:$0xff]
  %v58 = vld [vmem:[#allocation2 + $0x40] sm:$0xff]
  %v59 = vld [vmem:[#allocation2 + $0x48] sm:$0xff]
  %v60 = vld [vmem:[#allocation2 + $0x50] sm:$0xff]
  %v61 = vld [vmem:[#allocation2 + $0x58] sm:$0xff]
  %v62 = vld [vmem:[#allocation2 + $0x60] sm:$0xff]
  %v63 = vld [vmem:[#allocation2 + $0x68] sm:$0xff]
  %v64 = vld [vmem:[#allocation2 + $0x70] sm:$0xff]
  %v65 = vld [vmem:[#allocation2 + $0x78] sm:$0xff]
  %v66 = vld [vmem:[%s1] sm:$0xf]
  %v67 = vld [vmem:[%s1 + $0x4] sm:$0xf]
  %v68 = vld [vmem:[%s1 + $0x8] sm:$0xf]
  %v69 = vld [vmem:[%s1 + $0xc] sm:$0xf]
  %v70 = vld [vmem:[%s1 + $0x10] sm:$0xf]
  %v71 = vld [vmem:[%s1 + $0x14] sm:$0xf]
  %v72 = vld [vmem:[%s1 + $0x18] sm:$0xf]
  %v73 = vld [vmem:[%s1 + $0x1c] sm:$0xf]
  %v74 = vld [vmem:[%s1 + $0x20] sm:$0xf]
  %v75 = vld [vmem:[%s1 + $0x24] sm:$0xf]
  %v76 = vld [vmem:[%s1 + $0x28] sm:$0xf]
  %v77 = vld [vmem:[%s1 + $0x2c] sm:$0xf]
  %v78 = vld [vmem:[%s1 + $0x30] sm:$0xf]
  %v79 = vld [vmem:[%s1 + $0x34] sm:$0xf]
  %v80 = vld [vmem:[%s1 + $0x38] sm:$0xf]
  %v81 = vld [vmem:[%s1 + $0x3c] sm:$0xf]
  %v98 = vunpack.c.l.b16 %v66
  %v99 = vunpack.c.l.b16 %v67
  %v100 = vunpack.c.l.b16 %v68
  %v101 = vunpack.c.l.b16 %v69
  %v102 = vunpack.c.l.b16 %v70
  %v103 = vunpack.c.l.b16 %v71
  %v104 = vunpack.c.l.b16 %v72
  %v105 = vunpack.c.l.b16 %v73
  %v106 = vunpack.c.l.b16 %v74
  %v107 = vunpack.c.l.b16 %v75
  %v108 = vunpack.c.l.b16 %v76
  %v109 = vunpack.c.l.b16 %v77
  %v110 = vunpack.c.l.b16 %v78
  %v111 = vunpack.c.l.b16 %v79
  %v112 = vunpack.c.l.b16 %v80
  %v113 = vunpack.c.l.b16 %v81
  %v114 = vpack.c.b16 %v99, %v98
  %v115 = vpack.c.b16 %v101, %v100
  %v116 = vpack.c.b16 %v103, %v102
  %v117 = vpack.c.b16 %v105, %v104
  %v118 = vpack.c.b16 %v107, %v106
  %v119 = vpack.c.b16 %v109, %v108
  %v120 = vpack.c.b16 %v111, %v110
  %v121 = vpack.c.b16 %v113, %v112
  %130 = vmatprep.subr.bf16.mxu0 0
  %131 = vmatpush1.bf16.msra.mxu0 %v121
  %132 = vmatprep.subr.bf16.mxu0 0
  %133 = vmatpush1.bf16.msra.mxu0 %v120
  %134 = vmatprep.subr.bf16.mxu0 0
  %135 = vmatpush1.bf16.msra.mxu0 %v119
  %136 = vmatprep.subr.bf16.mxu0 0
  %137 = vmatpush1.bf16.msra.mxu0 %v118
  %138 = vmatprep.subr.bf16.mxu0 0
  %139 = vmatpush1.bf16.msra.mxu0 %v117
  %140 = vmatprep.subr.bf16.mxu0 0
  %141 = vmatpush1.bf16.msra.mxu0 %v116
  %142 = vmatprep.subr.bf16.mxu0 0
  %143 = vmatpush1.bf16.msra.mxu0 %v115
  %144 = vmatprep.subr.bf16.mxu0 0
  %145 = vmatpush1.bf16.msra.mxu0 %v114
  %146 = vmatprep.subr.bf16.mxu0 0
  %147 = vmatpush2.bf16.msra.mxu0 0
  %148 = vmatprep.subr.bf16.mxu0 0
  %149 = vmatpush2.bf16.msra.mxu0 0
  %150 = vmatprep.subr.bf16.mxu0 0
  %151 = vmatpush2.bf16.msra.mxu0 0
  %152 = vmatprep.subr.bf16.mxu0 0
  %153 = vmatpush2.bf16.msra.mxu0 0
  %154 = vmatprep.subr.bf16.mxu0 0
  %155 = vmatpush2.bf16.msra.mxu0 0
  %156 = vmatprep.subr.bf16.mxu0 0
  %157 = vmatpush2.bf16.msra.mxu0 0
  %158 = vmatprep.subr.bf16.mxu0 0
  %159 = vmatpush2.bf16.msra.mxu0 0
  %160 = vmatprep.subr.bf16.mxu0 0
  %161 = vmatpush2.bf16.msra.mxu0 0
  %162 = vmatprep.mubr.bf16.mxu0 0
  %163 = vmatmul.mubr.bf16.gmra.mxu0 %v42
  %v164 = vpop.f32.mrf.mxu0
  %v165 = vadd.f32 0.0, %v164
  %v166 = vpop.f32.mrf.mxu0
  %v167 = vpop.f32.mrf.mxu0
  %v168 = vadd.f32 0.0, %v167
  %v169 = vpop.f32.mrf.mxu0
  %170 = vmatprep.mubr.bf16.mxu0 0
  %171 = vmatmul.mubr.bf16.gmra.mxu0 %v43
  %v172 = vpop.f32.mrf.mxu0
  %v173 = vadd.f32 0.0, %v172
  %v174 = vpop.f32.mrf.mxu0
  %v175 = vpop.f32.mrf.mxu0
  %v176 = vadd.f32 0.0, %v175
  %v177 = vpop.f32.mrf.mxu0
  %178 = vmatprep.mubr.bf16.mxu0 0
  %179 = vmatmul.mubr.bf16.gmra.mxu0 %v44
  %v180 = vpop.f32.mrf.mxu0
  %v181 = vadd.f32 0.0, %v180
  %v182 = vpop.f32.mrf.mxu0
  %v183 = vpop.f32.mrf.mxu0
  %v184 = vadd.f32 0.0, %v183
  %v185 = vpop.f32.mrf.mxu0
  %186 = vmatprep.mubr.bf16.mxu0 0
  %187 = vmatmul.mubr.bf16.gmra.mxu0 %v45
  %v188 = vpop.f32.mrf.mxu0
  %v189 = vadd.f32 0.0, %v188
  %v190 = vpop.f32.mrf.mxu0
  %v191 = vpop.f32.mrf.mxu0
  %v192 = vadd.f32 0.0, %v191
  %v193 = vpop.f32.mrf.mxu0
  %194 = vmatprep.mubr.bf16.mxu0 0
  %195 = vmatmul.mubr.bf16.gmra.mxu0 %v46
  %v196 = vpop.f32.mrf.mxu0
  %v197 = vadd.f32 0.0, %v196
  %v198 = vpop.f32.mrf.mxu0
  %v199 = vpop.f32.mrf.mxu0
  %v200 = vadd.f32 0.0, %v199
  %v201 = vpop.f32.mrf.mxu0
  %202 = vmatprep.mubr.bf16.mxu0 0
  %203 = vmatmul.mubr.bf16.gmra.mxu0 %v47
  %v204 = vpop.f32.mrf.mxu0
  %v205 = vadd.f32 0.0, %v204
  %v206 = vpop.f32.mrf.mxu0
  %v207 = vpop.f32.mrf.mxu0
  %v208 = vadd.f32 0.0, %v207
  %v209 = vpop.f32.mrf.mxu0
  %210 = vmatprep.mubr.bf16.mxu0 0
  %211 = vmatmul.mubr.bf16.gmra.mxu0 %v48
  %v212 = vpop.f32.mrf.mxu0
  %v213 = vadd.f32 0.0, %v212
  %v214 = vpop.f32.mrf.mxu0
  %v215 = vpop.f32.mrf.mxu0
  %v216 = vadd.f32 0.0, %v215
  %v217 = vpop.f32.mrf.mxu0
  %218 = vmatprep.mubr.bf16.mxu0 0
  %219 = vmatmul.mubr.bf16.gmra.mxu0 %v49
  %v220 = vpop.f32.mrf.mxu0
  %v221 = vadd.f32 0.0, %v220
  %v222 = vpop.f32.mrf.mxu0
  %v223 = vpop.f32.mrf.mxu0
  %v224 = vadd.f32 0.0, %v223
  %v225 = vpop.f32.mrf.mxu0
  %226 = vdwg.mxu0
  %v227 = vadd.f32 %v50, %v165
  %v228 = vadd.f32 %v51, %v168
  %v229 = vadd.f32 %v52, %v173
  %v230 = vadd.f32 %v53, %v176
  %v231 = vadd.f32 %v54, %v181
  %v232 = vadd.f32 %v55, %v184
  %v233 = vadd.f32 %v56, %v189
  %v234 = vadd.f32 %v57, %v192
  %v235 = vadd.f32 %v58, %v197
  %v236 = vadd.f32 %v59, %v200
  %v237 = vadd.f32 %v60, %v205
  %v238 = vadd.f32 %v61, %v208
  %v239 = vadd.f32 %v62, %v213
  %v240 = vadd.f32 %v63, %v216
  %v241 = vadd.f32 %v64, %v221
  %v242 = vadd.f32 %v65, %v224
  %243 = vst [vmem:[#allocation2] sm:$0xff] %v227
  %244 = vst [vmem:[#allocation2 + $0x8] sm:$0xff] %v228
  %245 = vst [vmem:[#allocation2 + $0x10] sm:$0xff] %v229
  %246 = vst [vmem:[#allocation2 + $0x18] sm:$0xff] %v230
  %247 = vst [vmem:[#allocation2 + $0x20] sm:$0xff] %v231
  %248 = vst [vmem:[#allocation2 + $0x28] sm:$0xff] %v232
  %249 = vst [vmem:[#allocation2 + $0x30] sm:$0xff] %v233
  %250 = vst [vmem:[#allocation2 + $0x38] sm:$0xff] %v234
  %251 = vst [vmem:[#allocation2 + $0x40] sm:$0xff] %v235
  %252 = vst [vmem:[#allocation2 + $0x48] sm:$0xff] %v236
  %253 = vst [vmem:[#allocation2 + $0x50] sm:$0xff] %v237
  %254 = vst [vmem:[#allocation2 + $0x58] sm:$0xff] %v238
  %255 = vst [vmem:[#allocation2 + $0x60] sm:$0xff] %v239
  %256 = vst [vmem:[#allocation2 + $0x68] sm:$0xff] %v240
  %257 = vst [vmem:[#allocation2 + $0x70] sm:$0xff] %v241
  %258 = vst [vmem:[#allocation2 + $0x78] sm:$0xff] %v242
  // Predicated region
  $region22: #{supervised_gcnn_forward.2} parent=0 // pred_check
    %p259 = pneg %p18
  $region23: #{supervised_gcnn_forward.2} parent=0 // pred_check_branch
    %261 = sbr.rel (%p259) target = $region25
  $region24: #{supervised_gcnn_forward.2} parent=0 // pred_region
    %v262 = vld [vmem:[#allocation2] sm:$0xff]
    %v263 = vld [vmem:[#allocation2 + $0x8] sm:$0xff]
    %v264 = vld [vmem:[#allocation2 + $0x10] sm:$0xff]
    %v265 = vld [vmem:[#allocation2 + $0x18] sm:$0xff]
    %v266 = vld [vmem:[#allocation2 + $0x20] sm:$0xff]
    %v267 = vld [vmem:[#allocation2 + $0x28] sm:$0xff]
    %v268 = vld [vmem:[#allocation2 + $0x30] sm:$0xff]
    %v269 = vld [vmem:[#allocation2 + $0x38] sm:$0xff]
    %v270 = vld [vmem:[#allocation2 + $0x40] sm:$0xff]
    %v271 = vld [vmem:[#allocation2 + $0x48] sm:$0xff]
    %v272 = vld [vmem:[#allocation2 + $0x50] sm:$0xff]
    %v273 = vld [vmem:[#allocation2 + $0x58] sm:$0xff]
    %v274 = vld [vmem:[#allocation2 + $0x60] sm:$0xff]
    %v275 = vld [vmem:[#allocation2 + $0x68] sm:$0xff]
    %v276 = vld [vmem:[#allocation2 + $0x70] sm:$0xff]
    %v277 = vld [vmem:[#allocation2 + $0x78] sm:$0xff]
    %v278 = vld [vmem:[%s2] sm:$0x1]
    %v280 = vlaneseq
    %v281 = vshrl.u32 %v280, 7
    %v282 = vsub.s32 0, %v281
    %v283 = vrot.slane %v278, %v282
    %v285 = vadd.f32 %v262, %v283
    %v286 = vadd.f32 %v263, %v283
    %v287 = vadd.f32 %v264, %v283
    %v288 = vadd.f32 %v265, %v283
    %v289 = vadd.f32 %v266, %v283
    %v290 = vadd.f32 %v267, %v283
    %v291 = vadd.f32 %v268, %v283
    %v292 = vadd.f32 %v269, %v283
    %v293 = vadd.f32 %v270, %v283
    %v294 = vadd.f32 %v271, %v283
    %v295 = vadd.f32 %v272, %v283
    %v296 = vadd.f32 %v273, %v283
    %v297 = vadd.f32 %v274, %v283
    %v298 = vadd.f32 %v275, %v283
    %v299 = vadd.f32 %v276, %v283
    %v300 = vadd.f32 %v277, %v283
    %v301 = vmax.f32 %v285, 0.0
    %v302 = vmax.f32 %v286, 0.0
    %v303 = vmax.f32 %v287, 0.0
    %v304 = vmax.f32 %v288, 0.0
    %v305 = vmax.f32 %v289, 0.0
    %v306 = vmax.f32 %v290, 0.0
    %v307 = vmax.f32 %v291, 0.0
    %v308 = vmax.f32 %v292, 0.0
    %v309 = vmax.f32 %v293, 0.0
    %v310 = vmax.f32 %v294, 0.0
    %v311 = vmax.f32 %v295, 0.0
    %v312 = vmax.f32 %v296, 0.0
    %v313 = vmax.f32 %v297, 0.0
    %v314 = vmax.f32 %v298, 0.0
    %v315 = vmax.f32 %v299, 0.0
    %v316 = vmax.f32 %v300, 0.0
    %v317 = vpack.c.bf16 %v302, %v301
    %v318 = vpack.c.bf16 %v304, %v303
    %v319 = vpack.c.bf16 %v306, %v305
    %v320 = vpack.c.bf16 %v308, %v307
    %v321 = vpack.c.bf16 %v310, %v309
    %v322 = vpack.c.bf16 %v312, %v311
    %v323 = vpack.c.bf16 %v314, %v313
    %v324 = vpack.c.bf16 %v316, %v315
    %v325 = vld [vmem:[%s3] sm:$0xf]
    %v326 = vld [vmem:[%s3 + $0x4] sm:$0xf]
    %v327 = vld [vmem:[%s3 + $0x8] sm:$0xf]
    %v328 = vld [vmem:[%s3 + $0xc] sm:$0xf]
    %v329 = vld [vmem:[%s3 + $0x10] sm:$0xf]
    %v330 = vld [vmem:[%s3 + $0x14] sm:$0xf]
    %v331 = vld [vmem:[%s3 + $0x18] sm:$0xf]
    %v332 = vld [vmem:[%s3 + $0x1c] sm:$0xf]
    %v333 = vld [vmem:[%s3 + $0x20] sm:$0xf]
    %v334 = vld [vmem:[%s3 + $0x24] sm:$0xf]
    %v335 = vld [vmem:[%s3 + $0x28] sm:$0xf]
    %v336 = vld [vmem:[%s3 + $0x2c] sm:$0xf]
    %v337 = vld [vmem:[%s3 + $0x30] sm:$0xf]
    %v338 = vld [vmem:[%s3 + $0x34] sm:$0xf]
    %v339 = vld [vmem:[%s3 + $0x38] sm:$0xf]
    %v340 = vld [vmem:[%s3 + $0x3c] sm:$0xf]
    %v357 = vunpack.c.l.b16 %v325
    %v358 = vunpack.c.l.b16 %v326
    %v359 = vunpack.c.l.b16 %v327
    %v360 = vunpack.c.l.b16 %v328
    %v361 = vunpack.c.l.b16 %v329
    %v362 = vunpack.c.l.b16 %v330
    %v363 = vunpack.c.l.b16 %v331
    %v364 = vunpack.c.l.b16 %v332
    %v365 = vunpack.c.l.b16 %v333
    %v366 = vunpack.c.l.b16 %v334
    %v367 = vunpack.c.l.b16 %v335
    %v368 = vunpack.c.l.b16 %v336
    %v369 = vunpack.c.l.b16 %v337
    %v370 = vunpack.c.l.b16 %v338
    %v371 = vunpack.c.l.b16 %v339
    %v372 = vunpack.c.l.b16 %v340
    %v373 = vpack.c.b16 %v358, %v357
    %v374 = vpack.c.b16 %v360, %v359
    %v375 = vpack.c.b16 %v362, %v361
    %v376 = vpack.c.b16 %v364, %v363
    %v377 = vpack.c.b16 %v366, %v365
    %v378 = vpack.c.b16 %v368, %v367
    %v379 = vpack.c.b16 %v370, %v369
    %v380 = vpack.c.b16 %v372, %v371
    %389 = vmatprep.subr.bf16.mxu0 0
    %390 = vmatpush1.bf16.msra.mxu0 %v380
    %391 = vmatprep.subr.bf16.mxu0 0
    %392 = vmatpush1.bf16.msra.mxu0 %v379
    %393 = vmatprep.subr.bf16.mxu0 0
    %394 = vmatpush1.bf16.msra.mxu0 %v378
    %395 = vmatprep.subr.bf16.mxu0 0
    %396 = vmatpush1.bf16.msra.mxu0 %v377
    %397 = vmatprep.subr.bf16.mxu0 0
    %398 = vmatpush1.bf16.msra.mxu0 %v376
    %399 = vmatprep.subr.bf16.mxu0 0
    %400 = vmatpush1.bf16.msra.mxu0 %v375
    %401 = vmatprep.subr.bf16.mxu0 0
    %402 = vmatpush1.bf16.msra.mxu0 %v374
    %403 = vmatprep.subr.bf16.mxu0 0
    %404 = vmatpush1.bf16.msra.mxu0 %v373
    %405 = vmatprep.subr.bf16.mxu0 0
    %406 = vmatpush2.bf16.msra.mxu0 0
    %407 = vmatprep.subr.bf16.mxu0 0
    %408 = vmatpush2.bf16.msra.mxu0 0
    %409 = vmatprep.subr.bf16.mxu0 0
    %410 = vmatpush2.bf16.msra.mxu0 0
    %411 = vmatprep.subr.bf16.mxu0 0
    %412 = vmatpush2.bf16.msra.mxu0 0
    %413 = vmatprep.subr.bf16.mxu0 0
    %414 = vmatpush2.bf16.msra.mxu0 0
    %415 = vmatprep.subr.bf16.mxu0 0
    %416 = vmatpush2.bf16.msra.mxu0 0
    %417 = vmatprep.subr.bf16.mxu0 0
    %418 = vmatpush2.bf16.msra.mxu0 0
    %419 = vmatprep.subr.bf16.mxu0 0
    %420 = vmatpush2.bf16.msra.mxu0 0
    %421 = vmatprep.mubr.bf16.mxu0 0
    %422 = vmatmul.mubr.bf16.gmra.mxu0 %v317
    %v423 = vpop.f32.mrf.mxu0
    %v424 = vadd.f32 0.0, %v423
    %v425 = vpop.f32.mrf.mxu0
    %v426 = vpop.f32.mrf.mxu0
    %v427 = vadd.f32 0.0, %v426
    %v428 = vpop.f32.mrf.mxu0
    %429 = vmatprep.mubr.bf16.mxu0 0
    %430 = vmatmul.mubr.bf16.gmra.mxu0 %v318
    %v431 = vpop.f32.mrf.mxu0
    %v432 = vadd.f32 0.0, %v431
    %v433 = vpop.f32.mrf.mxu0
    %v434 = vpop.f32.mrf.mxu0
    %v435 = vadd.f32 0.0, %v434
    %v436 = vpop.f32.mrf.mxu0
    %437 = vmatprep.mubr.bf16.mxu0 0
    %438 = vmatmul.mubr.bf16.gmra.mxu0 %v319
    %v439 = vpop.f32.mrf.mxu0
    %v440 = vadd.f32 0.0, %v439
    %v441 = vpop.f32.mrf.mxu0
    %v442 = vpop.f32.mrf.mxu0
    %v443 = vadd.f32 0.0, %v442
    %v444 = vpop.f32.mrf.mxu0
    %445 = vmatprep.mubr.bf16.mxu0 0
    %446 = vmatmul.mubr.bf16.gmra.mxu0 %v320
    %v447 = vpop.f32.mrf.mxu0
    %v448 = vadd.f32 0.0, %v447
    %v449 = vpop.f32.mrf.mxu0
    %v450 = vpop.f32.mrf.mxu0
    %v451 = vadd.f32 0.0, %v450
    %v452 = vpop.f32.mrf.mxu0
    %453 = vmatprep.mubr.bf16.mxu0 0
    %454 = vmatmul.mubr.bf16.gmra.mxu0 %v321
    %v455 = vpop.f32.mrf.mxu0
    %v456 = vadd.f32 0.0, %v455
    %v457 = vpop.f32.mrf.mxu0
    %v458 = vpop.f32.mrf.mxu0
    %v459 = vadd.f32 0.0, %v458
    %v460 = vpop.f32.mrf.mxu0
    %461 = vmatprep.mubr.bf16.mxu0 0
    %462 = vmatmul.mubr.bf16.gmra.mxu0 %v322
    %v463 = vpop.f32.mrf.mxu0
    %v464 = vadd.f32 0.0, %v463
    %v465 = vpop.f32.mrf.mxu0
    %v466 = vpop.f32.mrf.mxu0
    %v467 = vadd.f32 0.0, %v466
    %v468 = vpop.f32.mrf.mxu0
    %469 = vmatprep.mubr.bf16.mxu0 0
    %470 = vmatmul.mubr.bf16.gmra.mxu0 %v323
    %v471 = vpop.f32.mrf.mxu0
    %v472 = vadd.f32 0.0, %v471
    %v473 = vpop.f32.mrf.mxu0
    %v474 = vpop.f32.mrf.mxu0
    %v475 = vadd.f32 0.0, %v474
    %v476 = vpop.f32.mrf.mxu0
    %477 = vmatprep.mubr.bf16.mxu0 0
    %478 = vmatmul.mubr.bf16.gmra.mxu0 %v324
    %v479 = vpop.f32.mrf.mxu0
    %v480 = vadd.f32 0.0, %v479
    %v481 = vpop.f32.mrf.mxu0
    %v482 = vpop.f32.mrf.mxu0
    %v483 = vadd.f32 0.0, %v482
    %v484 = vpop.f32.mrf.mxu0
    %485 = vdwg.mxu0
    %v486 = vpack.c.bf16 %v427, %v424
    %v487 = vpack.c.bf16 %v435, %v432
    %v488 = vpack.c.bf16 %v443, %v440
    %v489 = vpack.c.bf16 %v451, %v448
    %v490 = vpack.c.bf16 %v459, %v456
    %v491 = vpack.c.bf16 %v467, %v464
    %v492 = vpack.c.bf16 %v475, %v472
    %v493 = vpack.c.bf16 %v483, %v480
    %v502 = vunpack.c.l.b16 %v486
    %v503 = vunpack.c.h.b16 %v486
    %v504 = vunpack.c.l.b16 %v487
    %v505 = vunpack.c.h.b16 %v487
    %v506 = vunpack.c.l.b16 %v488
    %v507 = vunpack.c.h.b16 %v488
    %v508 = vunpack.c.l.b16 %v489
    %v509 = vunpack.c.h.b16 %v489
    %v510 = vunpack.c.l.b16 %v490
    %v511 = vunpack.c.h.b16 %v490
    %v512 = vunpack.c.l.b16 %v491
    %v513 = vunpack.c.h.b16 %v491
    %v514 = vunpack.c.l.b16 %v492
    %v515 = vunpack.c.h.b16 %v492
    %v516 = vunpack.c.l.b16 %v493
    %v517 = vunpack.c.h.b16 %v493
    %v518 = vpack.c.b16 %v502, %v502
    %v519 = vpack.c.b16 %v503, %v503
    %v520 = vpack.c.b16 %v504, %v504
    %v521 = vpack.c.b16 %v505, %v505
    %v522 = vpack.c.b16 %v506, %v506
    %v523 = vpack.c.b16 %v507, %v507
    %v524 = vpack.c.b16 %v508, %v508
    %v525 = vpack.c.b16 %v509, %v509
    %v526 = vpack.c.b16 %v510, %v510
    %v527 = vpack.c.b16 %v511, %v511
    %v528 = vpack.c.b16 %v512, %v512
    %v529 = vpack.c.b16 %v513, %v513
    %v530 = vpack.c.b16 %v514, %v514
    %v531 = vpack.c.b16 %v515, %v515
    %v532 = vpack.c.b16 %v516, %v516
    %v533 = vpack.c.b16 %v517, %v517
    %550 = vst [vmem:[%s4] sm:$0xf] %v518
    %551 = vst [vmem:[%s4 + $0x4] sm:$0xf] %v519
    %552 = vst [vmem:[%s4 + $0x8] sm:$0xf] %v520
    %553 = vst [vmem:[%s4 + $0xc] sm:$0xf] %v521
    %554 = vst [vmem:[%s4 + $0x10] sm:$0xf] %v522
    %555 = vst [vmem:[%s4 + $0x14] sm:$0xf] %v523
    %556 = vst [vmem:[%s4 + $0x18] sm:$0xf] %v524
    %557 = vst [vmem:[%s4 + $0x1c] sm:$0xf] %v525
    %558 = vst [vmem:[%s4 + $0x20] sm:$0xf] %v526
    %559 = vst [vmem:[%s4 + $0x24] sm:$0xf] %v527
    %560 = vst [vmem:[%s4 + $0x28] sm:$0xf] %v528
    %561 = vst [vmem:[%s4 + $0x2c] sm:$0xf] %v529
    %562 = vst [vmem:[%s4 + $0x30] sm:$0xf] %v530
    %563 = vst [vmem:[%s4 + $0x34] sm:$0xf] %v531
    %564 = vst [vmem:[%s4 + $0x38] sm:$0xf] %v532
    %565 = vst [vmem:[%s4 + $0x3c] sm:$0xf] %v533
  $region25: #{supervised_gcnn_forward.2} parent=0 // pred_fallthru
    _
  // Predicated region
  $region26: #{supervised_gcnn_forward.2} parent=0 // pred_check
    _
  $region27: #{supervised_gcnn_forward.2} parent=0 // pred_check_branch
    %567 = sbr.rel (0) target = $region29
  $region28: #{supervised_gcnn_forward.2} parent=0 // pred_region
    _
  $region29: #{supervised_gcnn_forward.2} parent=0 // pred_fallthru
    _
  // Predicated region
  $region30: #{supervised_gcnn_forward.2} parent=0 // pred_check
    _
  $region31: #{supervised_gcnn_forward.2} parent=0 // pred_check_branch
    %569 = sbr.rel (0) target = $region33
  $region32: #{supervised_gcnn_forward.2} parent=0 // pred_region
    _
  $region33: #{supervised_gcnn_forward.2} parent=0 // pred_fallthru
    _

// kernel: supervised_gcnn_forward.3
$region0: #{supervised_gcnn_forward.3}
  #allocation0 [shape = 'u32[]', space=smem, size = 0x4, offset = 0x4, fixed_abs, tag = 'smem constant byte address 0x4 - core index']
  #allocation1 [shape = 'u32[144,128]{1,0:T(1,128)}', space=vmem, size = 0x12000, scoped, tag = 'internal scratch']
  #allocation2 [shape = 'f32[128,128]{1,0:T(8,128)}', space=vmem, size = 0x10000, scoped, tag = 'scratch operand']
  %s0 = inlined_call_operand.vmem [shape: s8[128,128], index: 0, kind: input, shape index: {}]
  %s1 = inlined_call_operand.vmem [shape: bf16[128,128], index: 1, kind: input, shape index: {}]
  %s2 = inlined_call_operand.vmem [shape: f32[1,128], index: 2, kind: input, shape index: {}]
  %s3 = inlined_call_operand.vmem [shape: bf16[128,128], index: 3, kind: output, shape index: {}]
  %s4 = sld [smem:[#allocation0]]
  $region30: #{supervised_gcnn_forward.3} parent=0
    _
  %s6 = ssub.s32 1, %s4
  %s7 = scalar_select 0, %s6, %s4
  // Predicated region
  $region2: #{supervised_gcnn_forward.3} parent=0 // pred_check
    _
  $region3: #{supervised_gcnn_forward.3} parent=0 // pred_check_branch
    %9 = sbr.rel (0) target = $region5
  $region4: #{supervised_gcnn_forward.3} parent=0 // pred_region
    _
  $region5: #{supervised_gcnn_forward.3} parent=0 // pred_fallthru
    _
  // Predicated region
  $region6: #{supervised_gcnn_forward.3} parent=0 // pred_check
    _
  $region7: #{supervised_gcnn_forward.3} parent=0 // pred_check_branch
    %11 = sbr.rel (0) target = $region9
  $region8: #{supervised_gcnn_forward.3} parent=0 // pred_region
    _
  $region9: #{supervised_gcnn_forward.3} parent=0 // pred_fallthru
    _
  // Predicated region
  $region10: #{supervised_gcnn_forward.3} parent=0 // pred_check
    _
  $region11: #{supervised_gcnn_forward.3} parent=0 // pred_check_branch
    %13 = sbr.rel (0) target = $region13
  $region12: #{supervised_gcnn_forward.3} parent=0 // pred_region
    _
  $region13: #{supervised_gcnn_forward.3} parent=0 // pred_fallthru
    _
  %p15 = scmp.eq.s32.totalorder 0, 0
  // Predicated region
  $region14: #{supervised_gcnn_forward.3} parent=0 // pred_check
    %p16 = pneg %p15
  $region15: #{supervised_gcnn_forward.3} parent=0 // pred_check_branch
    %18 = sbr.rel (%p16) target = $region17
  $region16: #{supervised_gcnn_forward.3} parent=0 // pred_region
    %19 = vst [vmem:[#allocation2] sm:$0xff] 0.0
    %20 = vst [vmem:[#allocation2 + $0x8] sm:$0xff] 0.0
    %21 = vst [vmem:[#allocation2 + $0x10] sm:$0xff] 0.0
    %22 = vst [vmem:[#allocation2 + $0x18] sm:$0xff] 0.0
    %23 = vst [vmem:[#allocation2 + $0x20] sm:$0xff] 0.0
    %24 = vst [vmem:[#allocation2 + $0x28] sm:$0xff] 0.0
    %25 = vst [vmem:[#allocation2 + $0x30] sm:$0xff] 0.0
    %26 = vst [vmem:[#allocation2 + $0x38] sm:$0xff] 0.0
    %27 = vst [vmem:[#allocation2 + $0x40] sm:$0xff] 0.0
    %28 = vst [vmem:[#allocation2 + $0x48] sm:$0xff] 0.0
    %29 = vst [vmem:[#allocation2 + $0x50] sm:$0xff] 0.0
    %30 = vst [vmem:[#allocation2 + $0x58] sm:$0xff] 0.0
    %31 = vst [vmem:[#allocation2 + $0x60] sm:$0xff] 0.0
    %32 = vst [vmem:[#allocation2 + $0x68] sm:$0xff] 0.0
    %33 = vst [vmem:[#allocation2 + $0x70] sm:$0xff] 0.0
    %34 = vst [vmem:[#allocation2 + $0x78] sm:$0xff] 0.0
  $region17: #{supervised_gcnn_forward.3} parent=0 // pred_fallthru
    _
  %v35 = vld [vmem:[%s0] sm:$0xff]
  %v36 = vld [vmem:[%s0 + $0x8] sm:$0xff]
  %v37 = vld [vmem:[%s0 + $0x10] sm:$0xff]
  %v38 = vld [vmem:[%s0 + $0x18] sm:$0xff]
  %v39 = vunpack.c.l.s8.bf16 %v35
  %v40 = vunpack.c.h.s8.bf16 %v35
  %v41 = vunpack.c.l.s8.bf16 %v36
  %v42 = vunpack.c.h.s8.bf16 %v36
  %v43 = vunpack.c.l.s8.bf16 %v37
  %v44 = vunpack.c.h.s8.bf16 %v37
  %v45 = vunpack.c.l.s8.bf16 %v38
  %v46 = vunpack.c.h.s8.bf16 %v38
  %v47 = vld [vmem:[#allocation2] sm:$0xff]
  %v48 = vld [vmem:[#allocation2 + $0x8] sm:$0xff]
  %v49 = vld [vmem:[#allocation2 + $0x10] sm:$0xff]
  %v50 = vld [vmem:[#allocation2 + $0x18] sm:$0xff]
  %v51 = vld [vmem:[#allocation2 + $0x20] sm:$0xff]
  %v52 = vld [vmem:[#allocation2 + $0x28] sm:$0xff]
  %v53 = vld [vmem:[#allocation2 + $0x30] sm:$0xff]
  %v54 = vld [vmem:[#allocation2 + $0x38] sm:$0xff]
  %v55 = vld [vmem:[#allocation2 + $0x40] sm:$0xff]
  %v56 = vld [vmem:[#allocation2 + $0x48] sm:$0xff]
  %v57 = vld [vmem:[#allocation2 + $0x50] sm:$0xff]
  %v58 = vld [vmem:[#allocation2 + $0x58] sm:$0xff]
  %v59 = vld [vmem:[#allocation2 + $0x60] sm:$0xff]
  %v60 = vld [vmem:[#allocation2 + $0x68] sm:$0xff]
  %v61 = vld [vmem:[#allocation2 + $0x70] sm:$0xff]
  %v62 = vld [vmem:[#allocation2 + $0x78] sm:$0xff]
  %v63 = vld [vmem:[%s1] sm:$0xf]
  %v64 = vld [vmem:[%s1 + $0x4] sm:$0xf]
  %v65 = vld [vmem:[%s1 + $0x8] sm:$0xf]
  %v66 = vld [vmem:[%s1 + $0xc] sm:$0xf]
  %v67 = vld [vmem:[%s1 + $0x10] sm:$0xf]
  %v68 = vld [vmem:[%s1 + $0x14] sm:$0xf]
  %v69 = vld [vmem:[%s1 + $0x18] sm:$0xf]
  %v70 = vld [vmem:[%s1 + $0x1c] sm:$0xf]
  %v71 = vld [vmem:[%s1 + $0x20] sm:$0xf]
  %v72 = vld [vmem:[%s1 + $0x24] sm:$0xf]
  %v73 = vld [vmem:[%s1 + $0x28] sm:$0xf]
  %v74 = vld [vmem:[%s1 + $0x2c] sm:$0xf]
  %v75 = vld [vmem:[%s1 + $0x30] sm:$0xf]
  %v76 = vld [vmem:[%s1 + $0x34] sm:$0xf]
  %v77 = vld [vmem:[%s1 + $0x38] sm:$0xf]
  %v78 = vld [vmem:[%s1 + $0x3c] sm:$0xf]
  %v95 = vunpack.c.l.b16 %v63
  %v96 = vunpack.c.l.b16 %v64
  %v97 = vunpack.c.l.b16 %v65
  %v98 = vunpack.c.l.b16 %v66
  %v99 = vunpack.c.l.b16 %v67
  %v100 = vunpack.c.l.b16 %v68
  %v101 = vunpack.c.l.b16 %v69
  %v102 = vunpack.c.l.b16 %v70
  %v103 = vunpack.c.l.b16 %v71
  %v104 = vunpack.c.l.b16 %v72
  %v105 = vunpack.c.l.b16 %v73
  %v106 = vunpack.c.l.b16 %v74
  %v107 = vunpack.c.l.b16 %v75
  %v108 = vunpack.c.l.b16 %v76
  %v109 = vunpack.c.l.b16 %v77
  %v110 = vunpack.c.l.b16 %v78
  %v111 = vpack.c.b16 %v96, %v95
  %v112 = vpack.c.b16 %v98, %v97
  %v113 = vpack.c.b16 %v100, %v99
  %v114 = vpack.c.b16 %v102, %v101
  %v115 = vpack.c.b16 %v104, %v103
  %v116 = vpack.c.b16 %v106, %v105
  %v117 = vpack.c.b16 %v108, %v107
  %v118 = vpack.c.b16 %v110, %v109
  %127 = vmatprep.subr.bf16.mxu0 0
  %128 = vmatpush1.bf16.msra.mxu0 %v118
  %129 = vmatprep.subr.bf16.mxu0 0
  %130 = vmatpush1.bf16.msra.mxu0 %v117
  %131 = vmatprep.subr.bf16.mxu0 0
  %132 = vmatpush1.bf16.msra.mxu0 %v116
  %133 = vmatprep.subr.bf16.mxu0 0
  %134 = vmatpush1.bf16.msra.mxu0 %v115
  %135 = vmatprep.subr.bf16.mxu0 0
  %136 = vmatpush1.bf16.msra.mxu0 %v114
  %137 = vmatprep.subr.bf16.mxu0 0
  %138 = vmatpush1.bf16.msra.mxu0 %v113
  %139 = vmatprep.subr.bf16.mxu0 0
  %140 = vmatpush1.bf16.msra.mxu0 %v112
  %141 = vmatprep.subr.bf16.mxu0 0
  %142 = vmatpush1.bf16.msra.mxu0 %v111
  %143 = vmatprep.subr.bf16.mxu0 0
  %144 = vmatpush2.bf16.msra.mxu0 0
  %145 = vmatprep.subr.bf16.mxu0 0
  %146 = vmatpush2.bf16.msra.mxu0 0
  %147 = vmatprep.subr.bf16.mxu0 0
  %148 = vmatpush2.bf16.msra.mxu0 0
  %149 = vmatprep.subr.bf16.mxu0 0
  %150 = vmatpush2.bf16.msra.mxu0 0
  %151 = vmatprep.subr.bf16.mxu0 0
  %152 = vmatpush2.bf16.msra.mxu0 0
  %153 = vmatprep.subr.bf16.mxu0 0
  %154 = vmatpush2.bf16.msra.mxu0 0
  %155 = vmatprep.subr.bf16.mxu0 0
  %156 = vmatpush2.bf16.msra.mxu0 0
  %157 = vmatprep.subr.bf16.mxu0 0
  %158 = vmatpush2.bf16.msra.mxu0 0
  %159 = vmatprep.mubr.bf16.mxu0 0
  %160 = vmatmul.mubr.bf16.gmra.mxu0 %v39
  %v161 = vpop.f32.mrf.mxu0
  %v162 = vadd.f32 0.0, %v161
  %v163 = vpop.f32.mrf.mxu0
  %v164 = vpop.f32.mrf.mxu0
  %v165 = vadd.f32 0.0, %v164
  %v166 = vpop.f32.mrf.mxu0
  %167 = vmatprep.mubr.bf16.mxu0 0
  %168 = vmatmul.mubr.bf16.gmra.mxu0 %v40
  %v169 = vpop.f32.mrf.mxu0
  %v170 = vadd.f32 0.0, %v169
  %v171 = vpop.f32.mrf.mxu0
  %v172 = vpop.f32.mrf.mxu0
  %v173 = vadd.f32 0.0, %v172
  %v174 = vpop.f32.mrf.mxu0
  %175 = vmatprep.mubr.bf16.mxu0 0
  %176 = vmatmul.mubr.bf16.gmra.mxu0 %v41
  %v177 = vpop.f32.mrf.mxu0
  %v178 = vadd.f32 0.0, %v177
  %v179 = vpop.f32.mrf.mxu0
  %v180 = vpop.f32.mrf.mxu0
  %v181 = vadd.f32 0.0, %v180
  %v182 = vpop.f32.mrf.mxu0
  %183 = vmatprep.mubr.bf16.mxu0 0
  %184 = vmatmul.mubr.bf16.gmra.mxu0 %v42
  %v185 = vpop.f32.mrf.mxu0
  %v186 = vadd.f32 0.0, %v185
  %v187 = vpop.f32.mrf.mxu0
  %v188 = vpop.f32.mrf.mxu0
  %v189 = vadd.f32 0.0, %v188
  %v190 = vpop.f32.mrf.mxu0
  %191 = vmatprep.mubr.bf16.mxu0 0
  %192 = vmatmul.mubr.bf16.gmra.mxu0 %v43
  %v193 = vpop.f32.mrf.mxu0
  %v194 = vadd.f32 0.0, %v193
  %v195 = vpop.f32.mrf.mxu0
  %v196 = vpop.f32.mrf.mxu0
  %v197 = vadd.f32 0.0, %v196
  %v198 = vpop.f32.mrf.mxu0
  %199 = vmatprep.mubr.bf16.mxu0 0
  %200 = vmatmul.mubr.bf16.gmra.mxu0 %v44
  %v201 = vpop.f32.mrf.mxu0
  %v202 = vadd.f32 0.0, %v201
  %v203 = vpop.f32.mrf.mxu0
  %v204 = vpop.f32.mrf.mxu0
  %v205 = vadd.f32 0.0, %v204
  %v206 = vpop.f32.mrf.mxu0
  %207 = vmatprep.mubr.bf16.mxu0 0
  %208 = vmatmul.mubr.bf16.gmra.mxu0 %v45
  %v209 = vpop.f32.mrf.mxu0
  %v210 = vadd.f32 0.0, %v209
  %v211 = vpop.f32.mrf.mxu0
  %v212 = vpop.f32.mrf.mxu0
  %v213 = vadd.f32 0.0, %v212
  %v214 = vpop.f32.mrf.mxu0
  %215 = vmatprep.mubr.bf16.mxu0 0
  %216 = vmatmul.mubr.bf16.gmra.mxu0 %v46
  %v217 = vpop.f32.mrf.mxu0
  %v218 = vadd.f32 0.0, %v217
  %v219 = vpop.f32.mrf.mxu0
  %v220 = vpop.f32.mrf.mxu0
  %v221 = vadd.f32 0.0, %v220
  %v222 = vpop.f32.mrf.mxu0
  %223 = vdwg.mxu0
  %v224 = vadd.f32 %v47, %v162
  %v225 = vadd.f32 %v48, %v165
  %v226 = vadd.f32 %v49, %v170
  %v227 = vadd.f32 %v50, %v173
  %v228 = vadd.f32 %v51, %v178
  %v229 = vadd.f32 %v52, %v181
  %v230 = vadd.f32 %v53, %v186
  %v231 = vadd.f32 %v54, %v189
  %v232 = vadd.f32 %v55, %v194
  %v233 = vadd.f32 %v56, %v197
  %v234 = vadd.f32 %v57, %v202
  %v235 = vadd.f32 %v58, %v205
  %v236 = vadd.f32 %v59, %v210
  %v237 = vadd.f32 %v60, %v213
  %v238 = vadd.f32 %v61, %v218
  %v239 = vadd.f32 %v62, %v221
  %240 = vst [vmem:[#allocation2] sm:$0xff] %v224
  %241 = vst [vmem:[#allocation2 + $0x8] sm:$0xff] %v225
  %242 = vst [vmem:[#allocation2 + $0x10] sm:$0xff] %v226
  %243 = vst [vmem:[#allocation2 + $0x18] sm:$0xff] %v227
  %244 = vst [vmem:[#allocation2 + $0x20] sm:$0xff] %v228
  %245 = vst [vmem:[#allocation2 + $0x28] sm:$0xff] %v229
  %246 = vst [vmem:[#allocation2 + $0x30] sm:$0xff] %v230
  %247 = vst [vmem:[#allocation2 + $0x38] sm:$0xff] %v231
  %248 = vst [vmem:[#allocation2 + $0x40] sm:$0xff] %v232
  %249 = vst [vmem:[#allocation2 + $0x48] sm:$0xff] %v233
  %250 = vst [vmem:[#allocation2 + $0x50] sm:$0xff] %v234
  %251 = vst [vmem:[#allocation2 + $0x58] sm:$0xff] %v235
  %252 = vst [vmem:[#allocation2 + $0x60] sm:$0xff] %v236
  %253 = vst [vmem:[#allocation2 + $0x68] sm:$0xff] %v237
  %254 = vst [vmem:[#allocation2 + $0x70] sm:$0xff] %v238
  %255 = vst [vmem:[#allocation2 + $0x78] sm:$0xff] %v239
  // Predicated region
  $region18: #{supervised_gcnn_forward.3} parent=0 // pred_check
    %p256 = pneg %p15
  $region19: #{supervised_gcnn_forward.3} parent=0 // pred_check_branch
    %258 = sbr.rel (%p256) target = $region21
  $region20: #{supervised_gcnn_forward.3} parent=0 // pred_region
    %v259 = vld [vmem:[#allocation2] sm:$0xff]
    %v260 = vld [vmem:[#allocation2 + $0x8] sm:$0xff]
    %v261 = vld [vmem:[#allocation2 + $0x10] sm:$0xff]
    %v262 = vld [vmem:[#allocation2 + $0x18] sm:$0xff]
    %v263 = vld [vmem:[#allocation2 + $0x20] sm:$0xff]
    %v264 = vld [vmem:[#allocation2 + $0x28] sm:$0xff]
    %v265 = vld [vmem:[#allocation2 + $0x30] sm:$0xff]
    %v266 = vld [vmem:[#allocation2 + $0x38] sm:$0xff]
    %v267 = vld [vmem:[#allocation2 + $0x40] sm:$0xff]
    %v268 = vld [vmem:[#allocation2 + $0x48] sm:$0xff]
    %v269 = vld [vmem:[#allocation2 + $0x50] sm:$0xff]
    %v270 = vld [vmem:[#allocation2 + $0x58] sm:$0xff]
    %v271 = vld [vmem:[#allocation2 + $0x60] sm:$0xff]
    %v272 = vld [vmem:[#allocation2 + $0x68] sm:$0xff]
    %v273 = vld [vmem:[#allocation2 + $0x70] sm:$0xff]
    %v274 = vld [vmem:[#allocation2 + $0x78] sm:$0xff]
    %v275 = vld [vmem:[%s2] sm:$0x1]
    %v277 = vlaneseq
    %v278 = vshrl.u32 %v277, 7
    %v279 = vsub.s32 0, %v278
    %v280 = vrot.slane %v275, %v279
    %v282 = vadd.f32 %v259, %v280
    %v283 = vadd.f32 %v260, %v280
    %v284 = vadd.f32 %v261, %v280
    %v285 = vadd.f32 %v262, %v280
    %v286 = vadd.f32 %v263, %v280
    %v287 = vadd.f32 %v264, %v280
    %v288 = vadd.f32 %v265, %v280
    %v289 = vadd.f32 %v266, %v280
    %v290 = vadd.f32 %v267, %v280
    %v291 = vadd.f32 %v268, %v280
    %v292 = vadd.f32 %v269, %v280
    %v293 = vadd.f32 %v270, %v280
    %v294 = vadd.f32 %v271, %v280
    %v295 = vadd.f32 %v272, %v280
    %v296 = vadd.f32 %v273, %v280
    %v297 = vadd.f32 %v274, %v280
    %v298 = vpack.c.bf16 %v283, %v282
    %v299 = vpack.c.bf16 %v285, %v284
    %v300 = vpack.c.bf16 %v287, %v286
    %v301 = vpack.c.bf16 %v289, %v288
    %v302 = vpack.c.bf16 %v291, %v290
    %v303 = vpack.c.bf16 %v293, %v292
    %v304 = vpack.c.bf16 %v295, %v294
    %v305 = vpack.c.bf16 %v297, %v296
    %v314 = vunpack.c.l.b16 %v298
    %v315 = vunpack.c.h.b16 %v298
    %v316 = vunpack.c.l.b16 %v299
    %v317 = vunpack.c.h.b16 %v299
    %v318 = vunpack.c.l.b16 %v300
    %v319 = vunpack.c.h.b16 %v300
    %v320 = vunpack.c.l.b16 %v301
    %v321 = vunpack.c.h.b16 %v301
    %v322 = vunpack.c.l.b16 %v302
    %v323 = vunpack.c.h.b16 %v302
    %v324 = vunpack.c.l.b16 %v303
    %v325 = vunpack.c.h.b16 %v303
    %v326 = vunpack.c.l.b16 %v304
    %v327 = vunpack.c.h.b16 %v304
    %v328 = vunpack.c.l.b16 %v305
    %v329 = vunpack.c.h.b16 %v305
    %v330 = vpack.c.b16 %v314, %v314
    %v331 = vpack.c.b16 %v315, %v315
    %v332 = vpack.c.b16 %v316, %v316
    %v333 = vpack.c.b16 %v317, %v317
    %v334 = vpack.c.b16 %v318, %v318
    %v335 = vpack.c.b16 %v319, %v319
    %v336 = vpack.c.b16 %v320, %v320
    %v337 = vpack.c.b16 %v321, %v321
    %v338 = vpack.c.b16 %v322, %v322
    %v339 = vpack.c.b16 %v323, %v323
    %v340 = vpack.c.b16 %v324, %v324
    %v341 = vpack.c.b16 %v325, %v325
    %v342 = vpack.c.b16 %v326, %v326
    %v343 = vpack.c.b16 %v327, %v327
    %v344 = vpack.c.b16 %v328, %v328
    %v345 = vpack.c.b16 %v329, %v329
    %362 = vst [vmem:[%s3] sm:$0xf] %v330
    %363 = vst [vmem:[%s3 + $0x4] sm:$0xf] %v331
    %364 = vst [vmem:[%s3 + $0x8] sm:$0xf] %v332
    %365 = vst [vmem:[%s3 + $0xc] sm:$0xf] %v333
    %366 = vst [vmem:[%s3 + $0x10] sm:$0xf] %v334
    %367 = vst [vmem:[%s3 + $0x14] sm:$0xf] %v335
    %368 = vst [vmem:[%s3 + $0x18] sm:$0xf] %v336
    %369 = vst [vmem:[%s3 + $0x1c] sm:$0xf] %v337
    %370 = vst [vmem:[%s3 + $0x20] sm:$0xf] %v338
    %371 = vst [vmem:[%s3 + $0x24] sm:$0xf] %v339
    %372 = vst [vmem:[%s3 + $0x28] sm:$0xf] %v340
    %373 = vst [vmem:[%s3 + $0x2c] sm:$0xf] %v341
    %374 = vst [vmem:[%s3 + $0x30] sm:$0xf] %v342
    %375 = vst [vmem:[%s3 + $0x34] sm:$0xf] %v343
    %376 = vst [vmem:[%s3 + $0x38] sm:$0xf] %v344
    %377 = vst [vmem:[%s3 + $0x3c] sm:$0xf] %v345
  $region21: #{supervised_gcnn_forward.3} parent=0 // pred_fallthru
    _
  // Predicated region
  $region22: #{supervised_gcnn_forward.3} parent=0 // pred_check
    _
  $region23: #{supervised_gcnn_forward.3} parent=0 // pred_check_branch
    %379 = sbr.rel (0) target = $region25
  $region24: #{supervised_gcnn_forward.3} parent=0 // pred_region
    _
  $region25: #{supervised_gcnn_forward.3} parent=0 // pred_fallthru
    _
  // Predicated region
  $region26: #{supervised_gcnn_forward.3} parent=0 // pred_check
    _
  $region27: #{supervised_gcnn_forward.3} parent=0 // pred_check_branch
    %381 = sbr.rel (0) target = $region29
  $region28: #{supervised_gcnn_forward.3} parent=0 // pred_region
    _
  $region29: #{supervised_gcnn_forward.3} parent=0 // pred_fallthru
    _

</llo_original>
